<compile_context>
chip_gen: v5e
topology: v5e:2x2
jax: 0.10.0
libtpu: 0.0.40
codegen_flags: <defaults>
</compile_context>

<pallas_src>
import jax
import jax.numpy as jnp
from jax import lax
from jax.experimental import pallas as pl
from jax.experimental.pallas import tpu as pltpu

# Layer sizes from the PyTorch spec.
D_IN, D_H1, D_H2, D_OUT = 10, 20, 30, 40


def _round_up(n, m):
    return ((n + m - 1) // m) * m


def mlp_kernel(x_ref, w1_ref, b1_ref, w2_ref, b2_ref, w3_ref, b3_ref, o_ref):
    x = x_ref[...]                                                    # [Bt, 10] natural layout
    # Layer 1 — fold the input transpose into the matmul:
    #   h1T[o, b] = sum_k W1[o, k] * x[b, k]        -> [20, Bt] lane-dense
    h = lax.dot_general(w1_ref[...], x, (((1,), (1,)), ((), ())),
                        preferred_element_type=jnp.float32)
    h = jnp.maximum(h + b1_ref[...], 0.0)
    # Layer 2 — stays lane-dense:                     -> [30, Bt]
    h = jnp.dot(w2_ref[...], h, preferred_element_type=jnp.float32)
    h = jnp.maximum(h + b2_ref[...], 0.0)
    # Layer 3 — fold the output transpose into the matmul:
    #   out[b, o] = sum_k h2T[k, b] * W3[o, k]      -> [Bt, 40] natural layout
    out = lax.dot_general(h, w3_ref[...], (((0,), (1,)), ((), ())),
                          preferred_element_type=jnp.float32)
    out = jnp.maximum(out + b3_ref[...], 0.0)                         # final ReLU per spec
    o_ref[...] = out.astype(o_ref.dtype)


def net_forward(x, params, *, b_tile_max=8192):
    """x: [B, 10] float32 -> [B, 40] float32 (matches PyTorch Net.forward)."""
    w1, b1, w2, b2, w3, b3 = params        # weights [out, in], biases [out]
    B = x.shape[0]

    # Batch tile: big enough to amortize per-grid-step overhead, but at least
    # 2 grid steps (when B allows) so v7x megacore can split the batch axis;
    # multiple of 256 keeps blocks (8,128)-aligned without over-padding small B.
    b_tile = min(b_tile_max, _round_up(max((B + 1) // 2, 1), 256))
    B_pad = _round_up(B, b_tile)
    grid = (B_pad // b_tile,)

    if B_pad != B:
        # Padded rows become relu(bias) garbage and are sliced off below.
        x = jnp.pad(x, ((0, B_pad - B), (0, 0)))

    # Kernel-friendly bias layouts (tiny reshapes; pure layout plumbing).
    b1c = b1.reshape(D_H1, 1)      # broadcasts over lanes  for [20, Bt]
    b2c = b2.reshape(D_H2, 1)      # broadcasts over lanes  for [30, Bt]
    b3r = b3.reshape(1, D_OUT)     # broadcasts over rows   for [Bt, 40]

    # Weights/biases: full-array blocks, constant index_map -> VMEM-resident.
    def resident(a):
        return pl.BlockSpec(a.shape, lambda i: (0,) * a.ndim)

    flops = 2 * B_pad * (D_IN * D_H1 + D_H1 * D_H2 + D_H2 * D_OUT)
    w_bytes = 4 * (D_IN * D_H1 + D_H1 + D_H1 * D_H2 + D_H2
                   + D_H2 * D_OUT + D_OUT)
    bytes_accessed = 4 * B_pad * (D_IN + D_OUT) + w_bytes

    out = pl.pallas_call(
        mlp_kernel,
        out_shape=jax.ShapeDtypeStruct((B_pad, D_OUT), jnp.float32),
        grid=grid,
        in_specs=[
            pl.BlockSpec((b_tile, D_IN), lambda i: (i, 0)),
            resident(w1), resident(b1c),
            resident(w2), resident(b2c),
            resident(w3), resident(b3r),
        ],
        out_specs=pl.BlockSpec((b_tile, D_OUT), lambda i: (i, 0)),
        compiler_params=pltpu.CompilerParams(
            dimension_semantics=("parallel",),   # megacore sharding on v7x
        ),
        cost_estimate=pl.CostEstimate(flops=flops, transcendentals=0,
                                      bytes_accessed=bytes_accessed),
    )(x, w1, b1c, w2, b2c, w3, b3r)

    return out[:B] if B_pad != B else out


def init_params(key):
    """Deterministic params in PyTorch-native layout: W [out, in], b [out]."""
    ks = jax.random.split(key, 6)

    def linear(kw, kb, fan_in, fan_out):
        # Mimic PyTorch's default uniform(-1/sqrt(fan_in), 1/sqrt(fan_in)).
        bound = 1.0 / jnp.sqrt(jnp.float32(fan_in))
        w = jax.random.uniform(kw, (fan_out, fan_in), jnp.float32, -bound, bound)
        b = jax.random.uniform(kb, (fan_out,), jnp.float32, -bound, bound)
        return w, b

    w1, b1 = linear(ks[0], ks[1], D_IN, D_H1)
    w2, b2 = linear(ks[2], ks[3], D_H1, D_H2)
    w3, b3 = linear(ks[4], ks[5], D_H2, D_OUT)
    return (w1, b1, w2, b2, w3, b3)


def net_ref(x, params):
    """Pure-JAX reference (PyTorch semantics: x @ W.T + b, ReLU after each layer)."""
    w1, b1, w2, b2, w3, b3 = params
    h = jnp.maximum(x @ w1.T + b1, 0.0)
    h = jnp.maximum(h @ w2.T + b2, 0.0)
    return jnp.maximum(h @ w3.T + b3, 0.0)


if __name__ == "__main__":
    key = jax.random.PRNGKey(0)
    kx, kp = jax.random.split(key)
    params = init_params(kp)

    # batch=512 -> b_tile=256, 2 grid steps (no padding);
    # batch=100 -> exercises the padded-tail path.
    for batch in (512, 100):
        x = jax.random.normal(jax.random.fold_in(kx, batch),
                              (batch, D_IN), dtype=jnp.float32)
        out = jax.block_until_ready(net_forward(x, params))
        ref = net_ref(x, params)
        assert out.shape == (batch, D_OUT)
        assert jnp.allclose(out, ref, atol=1e-5, rtol=1e-5)

    print("KERNEL_OK")
</pallas_src>

<mosaic_0001>
module attributes {stable_mosaic.version = 11 : i64} {
  func.func @mlp_kernel(%arg0: i32, %arg1: memref<256x10xf32, #tpu.memory_space<vmem>>, %arg2: memref<20x10xf32, #tpu.memory_space<vmem>>, %arg3: memref<20x1xf32, #tpu.memory_space<vmem>>, %arg4: memref<30x20xf32, #tpu.memory_space<vmem>>, %arg5: memref<30x1xf32, #tpu.memory_space<vmem>>, %arg6: memref<40x30xf32, #tpu.memory_space<vmem>>, %arg7: memref<1x40xf32, #tpu.memory_space<vmem>>, %arg8: memref<256x40xf32, #tpu.memory_space<vmem>>) attributes {dimension_semantics = [#tpu.dimension_semantics<parallel>], iteration_bounds = array<i64: 2>, scalar_prefetch = 0 : i64, scratch_operands = 0 : i64, tpu.core_type = #tpu.core_type<tc>, window_params = [{transform_indices = @transform_0, window_bounds = array<i64: 256, 10>}, {pipeline_mode = #tpu.pipeline_mode<synchronous>, transform_indices = @transform_1, window_bounds = array<i64: 20, 10>}, {pipeline_mode = #tpu.pipeline_mode<synchronous>, transform_indices = @transform_2, window_bounds = array<i64: 20, 1>}, {pipeline_mode = #tpu.pipeline_mode<synchronous>, transform_indices = @transform_3, window_bounds = array<i64: 30, 20>}, {pipeline_mode = #tpu.pipeline_mode<synchronous>, transform_indices = @transform_4, window_bounds = array<i64: 30, 1>}, {pipeline_mode = #tpu.pipeline_mode<synchronous>, transform_indices = @transform_5, window_bounds = array<i64: 40, 30>}, {pipeline_mode = #tpu.pipeline_mode<synchronous>, transform_indices = @transform_6, window_bounds = array<i64: 1, 40>}, {transform_indices = @transform_7, window_bounds = array<i64: 256, 40>}]} {
    %c0 = arith.constant 0 : index
    %c0_0 = arith.constant 0 : index
    %0 = vector.load %arg1[%c0, %c0_0] : memref<256x10xf32, #tpu.memory_space<vmem>>, vector<256x10xf32>
    %c0_1 = arith.constant 0 : index
    %c0_2 = arith.constant 0 : index
    %1 = vector.load %arg2[%c0_1, %c0_2] : memref<20x10xf32, #tpu.memory_space<vmem>>, vector<20x10xf32>
    %cst = arith.constant dense<0.000000e+00> : vector<20x256xf32>
    %2 = tpu.matmul %1, %0, %cst {dimension_numbers = #tpu.dot_dimension_numbers<[1], [1], [0], [0], [0, 0, 1, 0], [], []>} : vector<20x10xf32>, vector<256x10xf32>, vector<20x256xf32> -> vector<20x256xf32>
    %c0_3 = arith.constant 0 : index
    %c0_4 = arith.constant 0 : index
    %3 = vector.load %arg3[%c0_3, %c0_4] : memref<20x1xf32, #tpu.memory_space<vmem>>, vector<20x1xf32>
    %4 = vector.broadcast %3 : vector<20x1xf32> to vector<20x256xf32>
    %5 = arith.addf %2, %4 : vector<20x256xf32>
    %cst_5 = arith.constant 0.000000e+00 : f32
    %6 = vector.broadcast %cst_5 : f32 to vector<20x256xf32>
    %7 = arith.maximumf %5, %6 : vector<20x256xf32>
    %c0_6 = arith.constant 0 : index
    %c0_7 = arith.constant 0 : index
    %8 = vector.load %arg4[%c0_6, %c0_7] : memref<30x20xf32, #tpu.memory_space<vmem>>, vector<30x20xf32>
    %cst_8 = arith.constant dense<0.000000e+00> : vector<30x256xf32>
    %9 = tpu.matmul %8, %7, %cst_8 {dimension_numbers = #tpu.dot_dimension_numbers<[1], [0], [0], [1], [0, 0, 1, 1], [], []>} : vector<30x20xf32>, vector<20x256xf32>, vector<30x256xf32> -> vector<30x256xf32>
    %c0_9 = arith.constant 0 : index
    %c0_10 = arith.constant 0 : index
    %10 = vector.load %arg5[%c0_9, %c0_10] : memref<30x1xf32, #tpu.memory_space<vmem>>, vector<30x1xf32>
    %11 = vector.broadcast %10 : vector<30x1xf32> to vector<30x256xf32>
    %12 = arith.addf %9, %11 : vector<30x256xf32>
    %cst_11 = arith.constant 0.000000e+00 : f32
    %13 = vector.broadcast %cst_11 : f32 to vector<30x256xf32>
    %14 = arith.maximumf %12, %13 : vector<30x256xf32>
    %c0_12 = arith.constant 0 : index
    %c0_13 = arith.constant 0 : index
    %15 = vector.load %arg6[%c0_12, %c0_13] : memref<40x30xf32, #tpu.memory_space<vmem>>, vector<40x30xf32>
    %cst_14 = arith.constant dense<0.000000e+00> : vector<256x40xf32>
    %16 = tpu.matmul %14, %15, %cst_14 {dimension_numbers = #tpu.dot_dimension_numbers<[0], [1], [1], [0], [0, 1, 1, 0], [], []>} : vector<30x256xf32>, vector<40x30xf32>, vector<256x40xf32> -> vector<256x40xf32>
    %c0_15 = arith.constant 0 : index
    %c0_16 = arith.constant 0 : index
    %17 = vector.load %arg7[%c0_15, %c0_16] : memref<1x40xf32, #tpu.memory_space<vmem>>, vector<1x40xf32>
    %18 = vector.broadcast %17 : vector<1x40xf32> to vector<256x40xf32>
    %19 = arith.addf %16, %18 : vector<256x40xf32>
    %cst_17 = arith.constant 0.000000e+00 : f32
    %20 = vector.broadcast %cst_17 : f32 to vector<256x40xf32>
    %21 = arith.maximumf %19, %20 : vector<256x40xf32>
    %c0_18 = arith.constant 0 : index
    %c0_19 = arith.constant 0 : index
    %22 = vector.load %arg8[%c0_18, %c0_19] : memref<256x40xf32, #tpu.memory_space<vmem>>, vector<256x40xf32>
    tpu.vector_store %arg8[%c0_18, %c0_19], %21 {strides = array<i32>} : memref<256x40xf32, #tpu.memory_space<vmem>>, vector<256x40xf32>,
    return
  }
  func.func @transform_0(%arg0: i32) -> (i32, i32) {
    %c0_i32 = arith.constant 0 : i32
    %c0_i32_0 = arith.constant 0 : i32
    return %arg0, %c0_i32 : i32, i32
  }
  func.func @transform_1(%arg0: i32) -> (i32, i32) {
    %c0_i32 = arith.constant 0 : i32
    %c0_i32_0 = arith.constant 0 : i32
    %c0_i32_1 = arith.constant 0 : i32
    return %c0_i32, %c0_i32_0 : i32, i32
  }
  func.func @transform_2(%arg0: i32) -> (i32, i32) {
    %c0_i32 = arith.constant 0 : i32
    %c0_i32_0 = arith.constant 0 : i32
    %c0_i32_1 = arith.constant 0 : i32
    return %c0_i32, %c0_i32_0 : i32, i32
  }
  func.func @transform_3(%arg0: i32) -> (i32, i32) {
    %c0_i32 = arith.constant 0 : i32
    %c0_i32_0 = arith.constant 0 : i32
    %c0_i32_1 = arith.constant 0 : i32
    return %c0_i32, %c0_i32_0 : i32, i32
  }
  func.func @transform_4(%arg0: i32) -> (i32, i32) {
    %c0_i32 = arith.constant 0 : i32
    %c0_i32_0 = arith.constant 0 : i32
    %c0_i32_1 = arith.constant 0 : i32
    return %c0_i32, %c0_i32_0 : i32, i32
  }
  func.func @transform_5(%arg0: i32) -> (i32, i32) {
    %c0_i32 = arith.constant 0 : i32
    %c0_i32_0 = arith.constant 0 : i32
    %c0_i32_1 = arith.constant 0 : i32
    return %c0_i32, %c0_i32_0 : i32, i32
  }
  func.func @transform_6(%arg0: i32) -> (i32, i32) {
    %c0_i32 = arith.constant 0 : i32
    %c0_i32_0 = arith.constant 0 : i32
    %c0_i32_1 = arith.constant 0 : i32
    return %c0_i32, %c0_i32_0 : i32, i32
  }
  func.func @transform_7(%arg0: i32) -> (i32, i32) {
    %c0_i32 = arith.constant 0 : i32
    %c0_i32_0 = arith.constant 0 : i32
    return %arg0, %c0_i32 : i32, i32
  }
}

</mosaic_0001>

<llo_original>
// kernel: tpu_custom_call.1
$region0: #{tpu_custom_call.1}
  #allocation0 [shape = 'u32[]', space=smem, size = 0x4, offset = 0x4, fixed_abs, tag = 'smem constant byte address 0x4 - core index']
  #allocation1 [shape = 'u32[72,128]{1,0:T(1,128)}', space=vmem, size = 0x9000, scoped, tag = 'internal scratch']
  %s0 = inlined_call_operand.vmem [shape: f32[512,10], index: 0, kind: input, shape index: {}]
  %s1 = inlined_call_operand.vmem [shape: f32[20,10], index: 1, kind: input, shape index: {}]
  %s2 = inlined_call_operand.vmem [shape: f32[20,1], index: 2, kind: input, shape index: {}]
  %s3 = inlined_call_operand.vmem [shape: f32[30,20], index: 3, kind: input, shape index: {}]
  %s4 = inlined_call_operand.vmem [shape: f32[30,1], index: 4, kind: input, shape index: {}]
  %s5 = inlined_call_operand.vmem [shape: f32[40,30], index: 5, kind: input, shape index: {}]
  %s6 = inlined_call_operand.vmem [shape: f32[1,40], index: 6, kind: input, shape index: {}]
  %s7 = inlined_call_operand.vmem [shape: f32[512,40], index: 7, kind: output, shape index: {}]
  %s8 = sld [smem:[#allocation0]]
  $region61: #{tpu_custom_call.1} parent=0
    _
  %s10 = ssub.s32 1, %s8
  %s11 = scalar_select 0, %s10, %s8
  loop: start=0, step=1, limit=4
  $region2: #{tpu_custom_call.1} parent=0 // loop_pre_header
    _
  $region3: #{tpu_custom_call.1} parent=0 // loop_header
    %s13 = sphi 0, %s17
    %p14 = scmp.ge.s32.totalorder %s13, 4
    %s23 = sphi 0, %s25
    %s26 = sphi 0, %s23
    %s27 = sphi 0, %s26
    %s43 = sphi 0, %s27
    %s47 = sphi 0, %s47
    %s49 = sphi 0, %s47
    %s50 = sphi 0, %s49
    %s64 = sphi 0, %s50
    %s68 = sphi 0, %s68
    %s70 = sphi 0, %s68
    %s71 = sphi 0, %s70
    %s85 = sphi 0, %s71
    %s89 = sphi 0, %s89
    %s91 = sphi 0, %s89
    %s92 = sphi 0, %s91
    %s106 = sphi 0, %s92
    %s110 = sphi 0, %s110
    %s112 = sphi 0, %s110
    %s113 = sphi 0, %s112
    %s127 = sphi 0, %s113
    %s131 = sphi 0, %s131
    %s133 = sphi 0, %s131
    %s134 = sphi 0, %s133
    %s148 = sphi 0, %s134
    %s152 = sphi 0, %s152
    %s154 = sphi 0, %s152
    %s155 = sphi 0, %s154
    %s169 = sphi 0, %s155
    %s175 = sphi 0, %s177
    %s178 = sphi 0, %s175
    %s179 = sphi 0, %s178
    %s195 = sphi 0, %s179
  $region4: #{tpu_custom_call.1} parent=0 // loop_header_branch
    %16 = sbr.rel (%p14) target = $region8
  $region5: #{tpu_custom_call.1} parent=0 // loop_body
    %s18 = ssub.s32 %s13, 1
    %s19 = ssub.s32 %s13, 2
    %s20 = sadd.s32 %s13, 1
    %s21 = ssub.s32 %s13, %s20
    %p22 = scmp.eq.s32.totalorder %s21, 0
    %s24 = sadd.s32 %s23, 1
    %s25 = scalar_select %p22, %s23, %s24
    %p28 = pneg %p22
    %p29 = scmp.eq.s32.totalorder %s13, 1
    %p30 = por %p28, %p29
    %p31 = scmp.ne.s32.totalorder %s23, %s26
    %p32 = scmp.eq.s32.totalorder %s13, 0
    %p33 = por %p31, %p32
    %p34 = scmp.ne.s32.totalorder %s23, %s26
    %p35 = scmp.eq.s32.totalorder %s18, 1
    %p36 = por %p34, %p35
    %p37 = scmp.ne.s32.totalorder %s26, %s27
    %p38 = scmp.eq.s32.totalorder %s18, 0
    %p39 = por %p37, %p38
    %p40 = scmp.ne.s32.totalorder %s26, %s27
    %p41 = scmp.eq.s32.totalorder %s19, 1
    %p42 = por %p40, %p41
    %p44 = scmp.ne.s32.totalorder %s27, %s43
    %p45 = scmp.eq.s32.totalorder %s19, 0
    %p46 = por %p44, %p45
    %s48 = sadd.s32 %s47, 1
    %p51 = scmp.eq.s32.totalorder %s13, 1
    %p52 = scmp.ne.s32.totalorder %s47, %s49
    %p53 = scmp.eq.s32.totalorder %s13, 0
    %p54 = por %p52, %p53
    %p55 = scmp.ne.s32.totalorder %s47, %s49
    %p56 = scmp.eq.s32.totalorder %s18, 1
    %p57 = por %p55, %p56
    %p58 = scmp.ne.s32.totalorder %s49, %s50
    %p59 = scmp.eq.s32.totalorder %s18, 0
    %p60 = por %p58, %p59
    %p61 = scmp.ne.s32.totalorder %s49, %s50
    %p62 = scmp.eq.s32.totalorder %s19, 1
    %p63 = por %p61, %p62
    %p65 = scmp.ne.s32.totalorder %s50, %s64
    %p66 = scmp.eq.s32.totalorder %s19, 0
    %p67 = por %p65, %p66
    %s69 = sadd.s32 %s68, 1
    %p72 = scmp.eq.s32.totalorder %s13, 1
    %p73 = scmp.ne.s32.totalorder %s68, %s70
    %p74 = scmp.eq.s32.totalorder %s13, 0
    %p75 = por %p73, %p74
    %p76 = scmp.ne.s32.totalorder %s68, %s70
    %p77 = scmp.eq.s32.totalorder %s18, 1
    %p78 = por %p76, %p77
    %p79 = scmp.ne.s32.totalorder %s70, %s71
    %p80 = scmp.eq.s32.totalorder %s18, 0
    %p81 = por %p79, %p80
    %p82 = scmp.ne.s32.totalorder %s70, %s71
    %p83 = scmp.eq.s32.totalorder %s19, 1
    %p84 = por %p82, %p83
    %p86 = scmp.ne.s32.totalorder %s71, %s85
    %p87 = scmp.eq.s32.totalorder %s19, 0
    %p88 = por %p86, %p87
    %s90 = sadd.s32 %s89, 1
    %p93 = scmp.eq.s32.totalorder %s13, 1
    %p94 = scmp.ne.s32.totalorder %s89, %s91
    %p95 = scmp.eq.s32.totalorder %s13, 0
    %p96 = por %p94, %p95
    %p97 = scmp.ne.s32.totalorder %s89, %s91
    %p98 = scmp.eq.s32.totalorder %s18, 1
    %p99 = por %p97, %p98
    %p100 = scmp.ne.s32.totalorder %s91, %s92
    %p101 = scmp.eq.s32.totalorder %s18, 0
    %p102 = por %p100, %p101
    %p103 = scmp.ne.s32.totalorder %s91, %s92
    %p104 = scmp.eq.s32.totalorder %s19, 1
    %p105 = por %p103, %p104
    %p107 = scmp.ne.s32.totalorder %s92, %s106
    %p108 = scmp.eq.s32.totalorder %s19, 0
    %p109 = por %p107, %p108
    %s111 = sadd.s32 %s110, 1
    %p114 = scmp.eq.s32.totalorder %s13, 1
    %p115 = scmp.ne.s32.totalorder %s110, %s112
    %p116 = scmp.eq.s32.totalorder %s13, 0
    %p117 = por %p115, %p116
    %p118 = scmp.ne.s32.totalorder %s110, %s112
    %p119 = scmp.eq.s32.totalorder %s18, 1
    %p120 = por %p118, %p119
    %p121 = scmp.ne.s32.totalorder %s112, %s113
    %p122 = scmp.eq.s32.totalorder %s18, 0
    %p123 = por %p121, %p122
    %p124 = scmp.ne.s32.totalorder %s112, %s113
    %p125 = scmp.eq.s32.totalorder %s19, 1
    %p126 = por %p124, %p125
    %p128 = scmp.ne.s32.totalorder %s113, %s127
    %p129 = scmp.eq.s32.totalorder %s19, 0
    %p130 = por %p128, %p129
    %s132 = sadd.s32 %s131, 1
    %p135 = scmp.eq.s32.totalorder %s13, 1
    %p136 = scmp.ne.s32.totalorder %s131, %s133
    %p137 = scmp.eq.s32.totalorder %s13, 0
    %p138 = por %p136, %p137
    %p139 = scmp.ne.s32.totalorder %s131, %s133
    %p140 = scmp.eq.s32.totalorder %s18, 1
    %p141 = por %p139, %p140
    %p142 = scmp.ne.s32.totalorder %s133, %s134
    %p143 = scmp.eq.s32.totalorder %s18, 0
    %p144 = por %p142, %p143
    %p145 = scmp.ne.s32.totalorder %s133, %s134
    %p146 = scmp.eq.s32.totalorder %s19, 1
    %p147 = por %p145, %p146
    %p149 = scmp.ne.s32.totalorder %s134, %s148
    %p150 = scmp.eq.s32.totalorder %s19, 0
    %p151 = por %p149, %p150
    %s153 = sadd.s32 %s152, 1
    %p156 = scmp.eq.s32.totalorder %s13, 1
    %p157 = scmp.ne.s32.totalorder %s152, %s154
    %p158 = scmp.eq.s32.totalorder %s13, 0
    %p159 = por %p157, %p158
    %p160 = scmp.ne.s32.totalorder %s152, %s154
    %p161 = scmp.eq.s32.totalorder %s18, 1
    %p162 = por %p160, %p161
    %p163 = scmp.ne.s32.totalorder %s154, %s155
    %p164 = scmp.eq.s32.totalorder %s18, 0
    %p165 = por %p163, %p164
    %p166 = scmp.ne.s32.totalorder %s154, %s155
    %p167 = scmp.eq.s32.totalorder %s19, 1
    %p168 = por %p166, %p167
    %p170 = scmp.ne.s32.totalorder %s155, %s169
    %p171 = scmp.eq.s32.totalorder %s19, 0
    %p172 = por %p170, %p171
    %s173 = ssub.s32 %s13, %s20
    %p174 = scmp.eq.s32.totalorder %s173, 0
    %s176 = sadd.s32 %s175, 1
    %s177 = scalar_select %p174, %s175, %s176
    %p180 = pneg %p174
    %p181 = scmp.eq.s32.totalorder %s13, 1
    %p182 = por %p180, %p181
    %p183 = scmp.ne.s32.totalorder %s175, %s178
    %p184 = scmp.eq.s32.totalorder %s13, 0
    %p185 = por %p183, %p184
    %p186 = scmp.ne.s32.totalorder %s175, %s178
    %p187 = scmp.eq.s32.totalorder %s18, 1
    %p188 = por %p186, %p187
    %p189 = scmp.ne.s32.totalorder %s178, %s179
    %p190 = scmp.eq.s32.totalorder %s18, 0
    %p191 = por %p189, %p190
    %p192 = scmp.ne.s32.totalorder %s178, %s179
    %p193 = scmp.eq.s32.totalorder %s19, 1
    %p194 = por %p192, %p193
    %p196 = scmp.ne.s32.totalorder %s179, %s195
    %p197 = scmp.eq.s32.totalorder %s19, 0
    %p198 = por %p196, %p197
    %p199 = scmp.le.s32.totalorder 1, %s13
    %p200 = scmp.lt.s32.totalorder %s13, 3
    %p201 = pnand %p199, %p200
    %p202 = pneg %p201
    // Predicated region
    $region9: #{tpu_custom_call.1} parent=5 // pred_check
      _
    $region10: #{tpu_custom_call.1} parent=5 // pred_check_branch
      %204 = sbr.rel (%p201) target = $region12
    $region11: #{tpu_custom_call.1} parent=5 // pred_region
      %s205 = ssub.s32 %s13, 1
      // Predicated region
      $region13: #{tpu_custom_call.1} parent=11 // pred_check
        %p206 = pneg %p60
      $region14: #{tpu_custom_call.1} parent=11 // pred_check_branch
        %208 = sbr.rel (%p206) target = $region16
      $region15: #{tpu_custom_call.1} parent=11 // pred_region
        _
      $region16: #{tpu_custom_call.1} parent=11 // pred_fallthru
        _
      // Predicated region
      $region17: #{tpu_custom_call.1} parent=11 // pred_check
        %p209 = pneg %p81
      $region18: #{tpu_custom_call.1} parent=11 // pred_check_branch
        %211 = sbr.rel (%p209) target = $region20
      $region19: #{tpu_custom_call.1} parent=11 // pred_region
        _
      $region20: #{tpu_custom_call.1} parent=11 // pred_fallthru
        _
      // Predicated region
      $region21: #{tpu_custom_call.1} parent=11 // pred_check
        %p212 = pneg %p102
      $region22: #{tpu_custom_call.1} parent=11 // pred_check_branch
        %214 = sbr.rel (%p212) target = $region24
      $region23: #{tpu_custom_call.1} parent=11 // pred_region
        _
      $region24: #{tpu_custom_call.1} parent=11 // pred_fallthru
        _
      // Predicated region
      $region25: #{tpu_custom_call.1} parent=11 // pred_check
        %p215 = pneg %p123
      $region26: #{tpu_custom_call.1} parent=11 // pred_check_branch
        %217 = sbr.rel (%p215) target = $region28
      $region27: #{tpu_custom_call.1} parent=11 // pred_region
        _
      $region28: #{tpu_custom_call.1} parent=11 // pred_fallthru
        _
      // Predicated region
      $region29: #{tpu_custom_call.1} parent=11 // pred_check
        %p218 = pneg %p144
      $region30: #{tpu_custom_call.1} parent=11 // pred_check_branch
        %220 = sbr.rel (%p218) target = $region32
      $region31: #{tpu_custom_call.1} parent=11 // pred_region
        _
      $region32: #{tpu_custom_call.1} parent=11 // pred_fallthru
        _
      // Predicated region
      $region33: #{tpu_custom_call.1} parent=11 // pred_check
        %p221 = pneg %p165
      $region34: #{tpu_custom_call.1} parent=11 // pred_check_branch
        %223 = sbr.rel (%p221) target = $region36
      $region35: #{tpu_custom_call.1} parent=11 // pred_region
        _
      $region36: #{tpu_custom_call.1} parent=11 // pred_fallthru
        _
    $region12: #{tpu_custom_call.1} parent=5 // pred_fallthru
      _
    %p224 = scmp.lt.s32.totalorder %s13, 2
    // Predicated region
    $region37: #{tpu_custom_call.1} parent=5 // pred_check
      %p225 = pneg %p224
    $region38: #{tpu_custom_call.1} parent=5 // pred_check_branch
      %227 = sbr.rel (%p225) target = $region40
    $region39: #{tpu_custom_call.1} parent=5 // pred_region
      // Predicated region
      $region41: #{tpu_custom_call.1} parent=39 // pred_check
        %p228 = pneg %p33
      $region42: #{tpu_custom_call.1} parent=39 // pred_check_branch
        %230 = sbr.rel (%p228) target = $region44
      $region43: #{tpu_custom_call.1} parent=39 // pred_region
        %s231 = smul.u32 32, %s13
        %p232 = scmp.lt.s32.totalorder %s231, 63
        %s233 = scalar_select %p232, %s231, 63
        %s234 = smul.addr %s233, 8
        %s235 = scalar_lea.vmem %s0, %s234
        %s236 = smul.u32 32, %s13
      $region44: #{tpu_custom_call.1} parent=39 // pred_fallthru
        _
    $region40: #{tpu_custom_call.1} parent=5 // pred_fallthru
      _
    %p237 = scmp.le.s32.totalorder 1, %s13
    %p238 = scmp.lt.s32.totalorder %s13, 3
    %p239 = pnand %p237, %p238
    %p240 = pneg %p239
    // Predicated region
    $region45: #{tpu_custom_call.1} parent=5 // pred_check
      _
    $region46: #{tpu_custom_call.1} parent=5 // pred_check_branch
      %242 = sbr.rel (%p239) target = $region48
    $region47: #{tpu_custom_call.1} parent=5 // pred_region
      %s243 = ssub.s32 %s13, 1
      %s244 = smul.u32 32, %s18
      %p245 = scmp.lt.s32.totalorder %s244, 63
      %s246 = scalar_select %p245, %s244, 63
      %s247 = smul.addr %s246, 8
      %s248 = scalar_lea.vmem %s0, %s247
      %p249 = pneg %p39
      %p250 = pneg %p36
      %p251 = pneg %p60
      %p252 = pneg %p57
      %p253 = pneg %p81
      %p254 = pneg %p78
      %p255 = pneg %p102
      %p256 = pneg %p99
      %p257 = pneg %p123
      %p258 = pneg %p120
      %p259 = pneg %p144
      %p260 = pneg %p141
      %p261 = pneg %p165
      %p262 = pneg %p162
      %p263 = pneg %p191
      %p264 = pneg %p188
      %s265 = smul.u32 32, %s18
      %p266 = scmp.lt.s32.totalorder %s265, 63
      %s267 = scalar_select %p266, %s265, 63
      %s268 = smul.addr %s267, 8
      %s269 = scalar_lea.vmem %s7, %s268
      %s270 = smul.u32 32, %s18
      %p271 = scmp.lt.s32.totalorder %s270, 63
      %s272 = scalar_select %p271, %s270, 63
      %s273 = smul.addr %s272, 8
      %s274 = scalar_lea.vmem %s0, %s273
      %s275 = smul.u32 32, %s18
      %s276 = smul.u32 32, %s18
      %p277 = scmp.lt.s32.totalorder %s276, 63
      %s278 = scalar_select %p277, %s276, 63
      %s279 = smul.addr %s278, 8
      %s280 = scalar_lea.vmem %s7, %s279
      %s281 = smul.u32 32, %s18
      %v282 = vld [vmem:[%s274] sm:$0xff]
      %v283 = vld [vmem:[%s274 + $0x8] sm:$0xff]
      %v284 = vld [vmem:[%s274 + $0x10] sm:$0xff]
      %v285 = vld [vmem:[%s274 + $0x18] sm:$0xff]
      %v286 = vld [vmem:[%s274 + $0x20] sm:$0xff]
      %v287 = vld [vmem:[%s274 + $0x28] sm:$0xff]
      %v288 = vld [vmem:[%s274 + $0x30] sm:$0xff]
      %v289 = vld [vmem:[%s274 + $0x38] sm:$0xff]
      %v290 = vld [vmem:[%s274 + $0x40] sm:$0xff]
      %v291 = vld [vmem:[%s274 + $0x48] sm:$0xff]
      %v292 = vld [vmem:[%s274 + $0x50] sm:$0xff]
      %v293 = vld [vmem:[%s274 + $0x58] sm:$0xff]
      %v294 = vld [vmem:[%s274 + $0x60] sm:$0xff]
      %v295 = vld [vmem:[%s274 + $0x68] sm:$0xff]
      %v296 = vld [vmem:[%s274 + $0x70] sm:$0xff]
      %v297 = vld [vmem:[%s274 + $0x78] sm:$0xff]
      %v298 = vld [vmem:[%s274 + $0x80] sm:$0xff]
      %v299 = vld [vmem:[%s274 + $0x88] sm:$0xff]
      %v300 = vld [vmem:[%s274 + $0x90] sm:$0xff]
      %v301 = vld [vmem:[%s274 + $0x98] sm:$0xff]
      %v302 = vld [vmem:[%s274 + $0xa0] sm:$0xff]
      %v303 = vld [vmem:[%s274 + $0xa8] sm:$0xff]
      %v304 = vld [vmem:[%s274 + $0xb0] sm:$0xff]
      %v305 = vld [vmem:[%s274 + $0xb8] sm:$0xff]
      %v306 = vld [vmem:[%s274 + $0xc0] sm:$0xff]
      %v307 = vld [vmem:[%s274 + $0xc8] sm:$0xff]
      %v308 = vld [vmem:[%s274 + $0xd0] sm:$0xff]
      %v309 = vld [vmem:[%s274 + $0xd8] sm:$0xff]
      %v310 = vld [vmem:[%s274 + $0xe0] sm:$0xff]
      %v311 = vld [vmem:[%s274 + $0xe8] sm:$0xff]
      %v312 = vld [vmem:[%s274 + $0xf0] sm:$0xff]
      %v313 = vld [vmem:[%s274 + $0xf8] sm:$0xff]
      %v314 = vld [vmem:[%s1] sm:$0xff]
      %v315 = vld [vmem:[%s1 + $0x8] sm:$0xff]
      %v316 = vld [vmem:[%s1 + $0x10] sm:$0xf]
      %v317 = vld [vmem:[%s2] sm:$0xff]
      %v318 = vld [vmem:[%s2 + $0x8] sm:$0xff]
      %v319 = vld [vmem:[%s2 + $0x10] sm:$0xf]
      %321 = vset.pattern.permute.xlu0 0
      %322 = vperm.xlu0 %321, %v317
      %v323 = vpop.permute.xlu0 %322
      %326 = vset.pattern.permute.xlu0 0
      %327 = vperm.xlu0 %326, %v318
      %v328 = vpop.permute.xlu0 %327
      %331 = vset.pattern.permute.xlu0 0
      %332 = vperm.xlu0 %331, %v319
      %v333 = vpop.permute.xlu0 %332
      %vm335 = vcmask 80896
      %v337 = vsel %vm335, %v314, 0
      %v340 = vsel %vm335, %v315, 0
      %v343 = vsel %vm335, %v316, 0
      %v346 = vsel %vm335, %v282, 0
      %v349 = vsel %vm335, %v283, 0
      %v352 = vsel %vm335, %v284, 0
      %v355 = vsel %vm335, %v285, 0
      %v358 = vsel %vm335, %v286, 0
      %v361 = vsel %vm335, %v287, 0
      %v364 = vsel %vm335, %v288, 0
      %v367 = vsel %vm335, %v289, 0
      %v370 = vsel %vm335, %v290, 0
      %v373 = vsel %vm335, %v291, 0
      %v376 = vsel %vm335, %v292, 0
      %v379 = vsel %vm335, %v293, 0
      %v382 = vsel %vm335, %v294, 0
      %v385 = vsel %vm335, %v295, 0
      %v388 = vsel %vm335, %v296, 0
      %v391 = vsel %vm335, %v297, 0
      %v394 = vsel %vm335, %v298, 0
      %v397 = vsel %vm335, %v299, 0
      %v400 = vsel %vm335, %v300, 0
      %v403 = vsel %vm335, %v301, 0
      %v406 = vsel %vm335, %v302, 0
      %v409 = vsel %vm335, %v303, 0
      %v412 = vsel %vm335, %v304, 0
      %v415 = vsel %vm335, %v305, 0
      %v418 = vsel %vm335, %v306, 0
      %v421 = vsel %vm335, %v307, 0
      %v424 = vsel %vm335, %v308, 0
      %v427 = vsel %vm335, %v309, 0
      %v430 = vsel %vm335, %v310, 0
      %v433 = vsel %vm335, %v311, 0
      %v436 = vsel %vm335, %v312, 0
      %v439 = vsel %vm335, %v313, 0
      %441 = vmatpush.xpose.msra.mxu0 %v391
      %442 = vmatpush.xpose.msra.mxu0 %v388
      %443 = vmatpush.xpose.msra.mxu0 %v385
      %444 = vmatpush.xpose.msra.mxu0 %v382
      %445 = vmatpush.xpose.msra.mxu0 %v379
      %446 = vmatpush.xpose.msra.mxu0 %v376
      %447 = vmatpush.xpose.msra.mxu0 %v373
      %448 = vmatpush.xpose.msra.mxu0 %v370
      %449 = vmatpush.xpose.msra.mxu0 %v367
      %450 = vmatpush.xpose.msra.mxu0 %v364
      %451 = vmatpush.xpose.msra.mxu0 %v361
      %452 = vmatpush.xpose.msra.mxu0 %v358
      %453 = vmatpush.xpose.msra.mxu0 %v355
      %454 = vmatpush.xpose.msra.mxu0 %v352
      %455 = vmatpush.xpose.msra.mxu0 %v349
      %456 = vmatpush.xpose.msra.mxu0 %v346
      %457 = vmatmul.f32.gmra.mxu0 %v337
      %v458 = vpop.f32.mrf.mxu0
      %v459 = vadd.f32 %v323, %v458
      %460 = vmatmul.f32.gmra.mxu0 %v340
      %v461 = vpop.f32.mrf.mxu0
      %v462 = vadd.f32 %v328, %v461
      %463 = vmatmul.f32.gmra.mxu0 %v343
      %v464 = vpop.f32.mrf.mxu0
      %v465 = vadd.f32 %v333, %v464
      %466 = vdwg.mxu0
      %467 = vmatpush.xpose.msra.mxu0 %v439
      %468 = vmatpush.xpose.msra.mxu0 %v436
      %469 = vmatpush.xpose.msra.mxu0 %v433
      %470 = vmatpush.xpose.msra.mxu0 %v430
      %471 = vmatpush.xpose.msra.mxu0 %v427
      %472 = vmatpush.xpose.msra.mxu0 %v424
      %473 = vmatpush.xpose.msra.mxu0 %v421
      %474 = vmatpush.xpose.msra.mxu0 %v418
      %475 = vmatpush.xpose.msra.mxu0 %v415
      %476 = vmatpush.xpose.msra.mxu0 %v412
      %477 = vmatpush.xpose.msra.mxu0 %v409
      %478 = vmatpush.xpose.msra.mxu0 %v406
      %479 = vmatpush.xpose.msra.mxu0 %v403
      %480 = vmatpush.xpose.msra.mxu0 %v400
      %481 = vmatpush.xpose.msra.mxu0 %v397
      %482 = vmatpush.xpose.msra.mxu0 %v394
      %483 = vmatmul.f32.gmra.mxu0 %v337
      %v484 = vpop.f32.mrf.mxu0
      %v485 = vadd.f32 %v323, %v484
      %486 = vmatmul.f32.gmra.mxu0 %v340
      %v487 = vpop.f32.mrf.mxu0
      %v488 = vadd.f32 %v328, %v487
      %489 = vmatmul.f32.gmra.mxu0 %v343
      %v490 = vpop.f32.mrf.mxu0
      %v491 = vadd.f32 %v333, %v490
      %492 = vdwg.mxu0
      %v493 = vmax.f32 %v459, 0.0
      %v494 = vmax.f32 %v485, 0.0
      %v495 = vmax.f32 %v462, 0.0
      %v496 = vmax.f32 %v488, 0.0
      %v497 = vmax.f32 %v465, 0.0
      %v498 = vmax.f32 %v491, 0.0
      %v499 = vld [vmem:[%s3] sm:$0xff]
      %v500 = vld [vmem:[%s3 + $0x8] sm:$0xff]
      %v501 = vld [vmem:[%s3 + $0x10] sm:$0xff]
      %v502 = vld [vmem:[%s3 + $0x18] sm:$0x3f]
      %v503 = vld [vmem:[%s4] sm:$0xff]
      %v504 = vld [vmem:[%s4 + $0x8] sm:$0xff]
      %v505 = vld [vmem:[%s4 + $0x10] sm:$0xff]
      %v506 = vld [vmem:[%s4 + $0x18] sm:$0x3f]
      %508 = vset.pattern.permute.xlu0 0
      %509 = vperm.xlu0 %508, %v503
      %v510 = vpop.permute.xlu0 %509
      %513 = vset.pattern.permute.xlu0 0
      %514 = vperm.xlu0 %513, %v504
      %v515 = vpop.permute.xlu0 %514
      %518 = vset.pattern.permute.xlu0 0
      %519 = vperm.xlu0 %518, %v505
      %v520 = vpop.permute.xlu0 %519
      %523 = vset.pattern.permute.xlu0 0
      %524 = vperm.xlu0 %523, %v506
      %v525 = vpop.permute.xlu0 %524
      %vm527 = vcmask 162816
      %v529 = vsel %vm527, %v499, 0
      %v532 = vsel %vm527, %v500, 0
      %v535 = vsel %vm527, %v501, 0
      %v538 = vsel %vm527, %v502, 0
      %vm540 = vcmask 1043456
      %v542 = vsel %vm540, %v497, 0
      %v545 = vsel %vm540, %v498, 0
      %547 = vmatpush.msra.mxu0 0.0
      %548 = vmatpush.msra.mxu0 0.0
      %549 = vmatpush.msra.mxu0 0.0
      %550 = vmatpush.msra.mxu0 0.0
      %551 = vmatpush.msra.mxu0 0.0
      %552 = vmatpush.msra.mxu0 0.0
      %553 = vmatpush.msra.mxu0 0.0
      %554 = vmatpush.msra.mxu0 0.0
      %555 = vmatpush.msra.mxu0 0.0
      %556 = vmatpush.msra.mxu0 0.0
      %557 = vmatpush.msra.mxu0 0.0
      %558 = vmatpush.msra.mxu0 0.0
      %559 = vmatpush.msra.mxu0 0.0
      %560 = vmatpush.msra.mxu0 %v542
      %561 = vmatpush.msra.mxu0 %v495
      %562 = vmatpush.msra.mxu0 %v493
      %563 = vmatmul.f32.gmra.mxu0 %v529
      %v564 = vpop.f32.mrf.mxu0
      %v565 = vadd.f32 %v510, %v564
      %566 = vmatmul.f32.gmra.mxu0 %v532
      %v567 = vpop.f32.mrf.mxu0
      %v568 = vadd.f32 %v515, %v567
      %569 = vmatmul.f32.gmra.mxu0 %v535
      %v570 = vpop.f32.mrf.mxu0
      %v571 = vadd.f32 %v520, %v570
      %572 = vmatmul.f32.gmra.mxu0 %v538
      %v573 = vpop.f32.mrf.mxu0
      %v574 = vadd.f32 %v525, %v573
      %575 = vdwg.mxu0
      %576 = vmatpush.msra.mxu0 0.0
      %577 = vmatpush.msra.mxu0 0.0
      %578 = vmatpush.msra.mxu0 0.0
      %579 = vmatpush.msra.mxu0 0.0
      %580 = vmatpush.msra.mxu0 0.0
      %581 = vmatpush.msra.mxu0 0.0
      %582 = vmatpush.msra.mxu0 0.0
      %583 = vmatpush.msra.mxu0 0.0
      %584 = vmatpush.msra.mxu0 0.0
      %585 = vmatpush.msra.mxu0 0.0
      %586 = vmatpush.msra.mxu0 0.0
      %587 = vmatpush.msra.mxu0 0.0
      %588 = vmatpush.msra.mxu0 0.0
      %589 = vmatpush.msra.mxu0 %v545
      %590 = vmatpush.msra.mxu0 %v496
      %591 = vmatpush.msra.mxu0 %v494
      %592 = vmatmul.f32.gmra.mxu0 %v529
      %v593 = vpop.f32.mrf.mxu0
      %v594 = vadd.f32 %v510, %v593
      %595 = vmatmul.f32.gmra.mxu0 %v532
      %v596 = vpop.f32.mrf.mxu0
      %v597 = vadd.f32 %v515, %v596
      %598 = vmatmul.f32.gmra.mxu0 %v535
      %v599 = vpop.f32.mrf.mxu0
      %v600 = vadd.f32 %v520, %v599
      %601 = vmatmul.f32.gmra.mxu0 %v538
      %v602 = vpop.f32.mrf.mxu0
      %v603 = vadd.f32 %v525, %v602
      %604 = vdwg.mxu0
      %v605 = vmax.f32 %v565, 0.0
      %v606 = vmax.f32 %v594, 0.0
      %v607 = vmax.f32 %v568, 0.0
      %v608 = vmax.f32 %v597, 0.0
      %v609 = vmax.f32 %v571, 0.0
      %v610 = vmax.f32 %v600, 0.0
      %v611 = vmax.f32 %v574, 0.0
      %v612 = vmax.f32 %v603, 0.0
      %v613 = vld [vmem:[%s5] sm:$0xff]
      %v614 = vld [vmem:[%s5 + $0x8] sm:$0xff]
      %v615 = vld [vmem:[%s5 + $0x10] sm:$0xff]
      %v616 = vld [vmem:[%s5 + $0x18] sm:$0xff]
      %v617 = vld [vmem:[%s5 + $0x20] sm:$0xff]
      %v618 = vld [vmem:[%s6] sm:$0x1]
      %v620 = vperm.slane %v618, 0
      %622 = vxpose.xlu0.b32.start [1/16] %v605, 128
      %623 = vxpose.xlu0.b32.cont [2/16] %v607, 128
      %624 = vxpose.xlu0.b32.cont [3/16] %v609, 128
      %625 = vxpose.xlu0.b32.cont [4/16] %v611, 128
      %626 = vxpose.xlu0.b32.cont [5/16] 0.0, 128
      %627 = vxpose.xlu0.b32.cont [6/16] 0.0, 128
      %628 = vxpose.xlu0.b32.cont [7/16] 0.0, 128
      %629 = vxpose.xlu0.b32.cont [8/16] 0.0, 128
      %630 = vxpose.xlu0.b32.cont [9/16] 0.0, 128
      %631 = vxpose.xlu0.b32.cont [10/16] 0.0, 128
      %632 = vxpose.xlu0.b32.cont [11/16] 0.0, 128
      %633 = vxpose.xlu0.b32.cont [12/16] 0.0, 128
      %634 = vxpose.xlu0.b32.cont [13/16] 0.0, 128
      %635 = vxpose.xlu0.b32.cont [14/16] 0.0, 128
      %636 = vxpose.xlu0.b32.cont [15/16] 0.0, 128
      %637 = vxpose.xlu0.b32.end [16/16] 0.0, 128
      %v638 = vpop.trf.xlu0
      %v639 = vpop.trf.xlu0
      %v640 = vpop.trf.xlu0
      %v641 = vpop.trf.xlu0
      %v642 = vpop.trf.xlu0
      %v643 = vpop.trf.xlu0
      %v644 = vpop.trf.xlu0
      %v645 = vpop.trf.xlu0
      %v646 = vpop.trf.xlu0
      %v647 = vpop.trf.xlu0
      %v648 = vpop.trf.xlu0
      %v649 = vpop.trf.xlu0
      %v650 = vpop.trf.xlu0
      %v651 = vpop.trf.xlu0
      %v652 = vpop.trf.xlu0
      %v653 = vpop.trf.xlu0
      %654 = vxpose.xlu0.b32.start [1/16] %v606, 128
      %655 = vxpose.xlu0.b32.cont [2/16] %v608, 128
      %656 = vxpose.xlu0.b32.cont [3/16] %v610, 128
      %657 = vxpose.xlu0.b32.cont [4/16] %v612, 128
      %658 = vxpose.xlu0.b32.cont [5/16] 0.0, 128
      %659 = vxpose.xlu0.b32.cont [6/16] 0.0, 128
      %660 = vxpose.xlu0.b32.cont [7/16] 0.0, 128
      %661 = vxpose.xlu0.b32.cont [8/16] 0.0, 128
      %662 = vxpose.xlu0.b32.cont [9/16] 0.0, 128
      %663 = vxpose.xlu0.b32.cont [10/16] 0.0, 128
      %664 = vxpose.xlu0.b32.cont [11/16] 0.0, 128
      %665 = vxpose.xlu0.b32.cont [12/16] 0.0, 128
      %666 = vxpose.xlu0.b32.cont [13/16] 0.0, 128
      %667 = vxpose.xlu0.b32.cont [14/16] 0.0, 128
      %668 = vxpose.xlu0.b32.cont [15/16] 0.0, 128
      %669 = vxpose.xlu0.b32.end [16/16] 0.0, 128
      %v670 = vpop.trf.xlu0
      %v671 = vpop.trf.xlu0
      %v672 = vpop.trf.xlu0
      %v673 = vpop.trf.xlu0
      %v674 = vpop.trf.xlu0
      %v675 = vpop.trf.xlu0
      %v676 = vpop.trf.xlu0
      %v677 = vpop.trf.xlu0
      %v678 = vpop.trf.xlu0
      %v679 = vpop.trf.xlu0
      %v680 = vpop.trf.xlu0
      %v681 = vpop.trf.xlu0
      %v682 = vpop.trf.xlu0
      %v683 = vpop.trf.xlu0
      %v684 = vpop.trf.xlu0
      %v685 = vpop.trf.xlu0
      %vm686 = vcmask 244736
      %v688 = vsel %vm686, %v638, 0
      %v691 = vsel %vm686, %v639, 0
      %v694 = vsel %vm686, %v640, 0
      %v697 = vsel %vm686, %v641, 0
      %v700 = vsel %vm686, %v642, 0
      %v703 = vsel %vm686, %v643, 0
      %v706 = vsel %vm686, %v644, 0
      %v709 = vsel %vm686, %v645, 0
      %v712 = vsel %vm686, %v646, 0
      %v715 = vsel %vm686, %v647, 0
      %v718 = vsel %vm686, %v648, 0
      %v721 = vsel %vm686, %v649, 0
      %v724 = vsel %vm686, %v650, 0
      %v727 = vsel %vm686, %v651, 0
      %v730 = vsel %vm686, %v652, 0
      %v733 = vsel %vm686, %v653, 0
      %v736 = vsel %vm686, %v670, 0
      %v739 = vsel %vm686, %v671, 0
      %v742 = vsel %vm686, %v672, 0
      %v745 = vsel %vm686, %v673, 0
      %v748 = vsel %vm686, %v674, 0
      %v751 = vsel %vm686, %v675, 0
      %v754 = vsel %vm686, %v676, 0
      %v757 = vsel %vm686, %v677, 0
      %v760 = vsel %vm686, %v678, 0
      %v763 = vsel %vm686, %v679, 0
      %v766 = vsel %vm686, %v680, 0
      %v769 = vsel %vm686, %v681, 0
      %v772 = vsel %vm686, %v682, 0
      %v775 = vsel %vm686, %v683, 0
      %v778 = vsel %vm686, %v684, 0
      %v781 = vsel %vm686, %v685, 0
      %v784 = vsel %vm686, %v613, 0
      %v787 = vsel %vm686, %v614, 0
      %v790 = vsel %vm686, %v615, 0
      %v793 = vsel %vm686, %v616, 0
      %v796 = vsel %vm686, %v617, 0
      %798 = vmatpush.xpose.msra.mxu0 0.0
      %799 = vmatpush.xpose.msra.mxu0 0.0
      %800 = vmatpush.xpose.msra.mxu0 0.0
      %801 = vmatpush.xpose.msra.mxu0 0.0
      %802 = vmatpush.xpose.msra.mxu0 0.0
      %803 = vmatpush.xpose.msra.mxu0 0.0
      %804 = vmatpush.xpose.msra.mxu0 0.0
      %805 = vmatpush.xpose.msra.mxu0 0.0
      %806 = vmatpush.xpose.msra.mxu0 0.0
      %807 = vmatpush.xpose.msra.mxu0 0.0
      %808 = vmatpush.xpose.msra.mxu0 0.0
      %809 = vmatpush.xpose.msra.mxu0 %v796
      %810 = vmatpush.xpose.msra.mxu0 %v793
      %811 = vmatpush.xpose.msra.mxu0 %v790
      %812 = vmatpush.xpose.msra.mxu0 %v787
      %813 = vmatpush.xpose.msra.mxu0 %v784
      %814 = vmatmul.f32.gmra.mxu0 %v688
      %v815 = vpop.f32.mrf.mxu0
      %v816 = vadd.f32 %v620, %v815
      %817 = vmatmul.f32.gmra.mxu0 %v691
      %v818 = vpop.f32.mrf.mxu0
      %v819 = vadd.f32 %v620, %v818
      %820 = vmatmul.f32.gmra.mxu0 %v694
      %v821 = vpop.f32.mrf.mxu0
      %v822 = vadd.f32 %v620, %v821
      %823 = vmatmul.f32.gmra.mxu0 %v697
      %v824 = vpop.f32.mrf.mxu0
      %v825 = vadd.f32 %v620, %v824
      %826 = vmatmul.f32.gmra.mxu0 %v700
      %v827 = vpop.f32.mrf.mxu0
      %v828 = vadd.f32 %v620, %v827
      %829 = vmatmul.f32.gmra.mxu0 %v703
      %v830 = vpop.f32.mrf.mxu0
      %v831 = vadd.f32 %v620, %v830
      %832 = vmatmul.f32.gmra.mxu0 %v706
      %v833 = vpop.f32.mrf.mxu0
      %v834 = vadd.f32 %v620, %v833
      %835 = vmatmul.f32.gmra.mxu0 %v709
      %v836 = vpop.f32.mrf.mxu0
      %v837 = vadd.f32 %v620, %v836
      %838 = vmatmul.f32.gmra.mxu0 %v712
      %v839 = vpop.f32.mrf.mxu0
      %v840 = vadd.f32 %v620, %v839
      %841 = vmatmul.f32.gmra.mxu0 %v715
      %v842 = vpop.f32.mrf.mxu0
      %v843 = vadd.f32 %v620, %v842
      %844 = vmatmul.f32.gmra.mxu0 %v718
      %v845 = vpop.f32.mrf.mxu0
      %v846 = vadd.f32 %v620, %v845
      %847 = vmatmul.f32.gmra.mxu0 %v721
      %v848 = vpop.f32.mrf.mxu0
      %v849 = vadd.f32 %v620, %v848
      %850 = vmatmul.f32.gmra.mxu0 %v724
      %v851 = vpop.f32.mrf.mxu0
      %v852 = vadd.f32 %v620, %v851
      %853 = vmatmul.f32.gmra.mxu0 %v727
      %v854 = vpop.f32.mrf.mxu0
      %v855 = vadd.f32 %v620, %v854
      %856 = vmatmul.f32.gmra.mxu0 %v730
      %v857 = vpop.f32.mrf.mxu0
      %v858 = vadd.f32 %v620, %v857
      %859 = vmatmul.f32.gmra.mxu0 %v733
      %v860 = vpop.f32.mrf.mxu0
      %v861 = vadd.f32 %v620, %v860
      %862 = vmatmul.f32.gmra.mxu0 %v736
      %v863 = vpop.f32.mrf.mxu0
      %v864 = vadd.f32 %v620, %v863
      %865 = vmatmul.f32.gmra.mxu0 %v739
      %v866 = vpop.f32.mrf.mxu0
      %v867 = vadd.f32 %v620, %v866
      %868 = vmatmul.f32.gmra.mxu0 %v742
      %v869 = vpop.f32.mrf.mxu0
      %v870 = vadd.f32 %v620, %v869
      %871 = vmatmul.f32.gmra.mxu0 %v745
      %v872 = vpop.f32.mrf.mxu0
      %v873 = vadd.f32 %v620, %v872
      %874 = vmatmul.f32.gmra.mxu0 %v748
      %v875 = vpop.f32.mrf.mxu0
      %v876 = vadd.f32 %v620, %v875
      %877 = vmatmul.f32.gmra.mxu0 %v751
      %v878 = vpop.f32.mrf.mxu0
      %v879 = vadd.f32 %v620, %v878
      %880 = vmatmul.f32.gmra.mxu0 %v754
      %v881 = vpop.f32.mrf.mxu0
      %v882 = vadd.f32 %v620, %v881
      %883 = vmatmul.f32.gmra.mxu0 %v757
      %v884 = vpop.f32.mrf.mxu0
      %v885 = vadd.f32 %v620, %v884
      %886 = vmatmul.f32.gmra.mxu0 %v760
      %v887 = vpop.f32.mrf.mxu0
      %v888 = vadd.f32 %v620, %v887
      %889 = vmatmul.f32.gmra.mxu0 %v763
      %v890 = vpop.f32.mrf.mxu0
      %v891 = vadd.f32 %v620, %v890
      %892 = vmatmul.f32.gmra.mxu0 %v766
      %v893 = vpop.f32.mrf.mxu0
      %v894 = vadd.f32 %v620, %v893
      %895 = vmatmul.f32.gmra.mxu0 %v769
      %v896 = vpop.f32.mrf.mxu0
      %v897 = vadd.f32 %v620, %v896
      %898 = vmatmul.f32.gmra.mxu0 %v772
      %v899 = vpop.f32.mrf.mxu0
      %v900 = vadd.f32 %v620, %v899
      %901 = vmatmul.f32.gmra.mxu0 %v775
      %v902 = vpop.f32.mrf.mxu0
      %v903 = vadd.f32 %v620, %v902
      %904 = vmatmul.f32.gmra.mxu0 %v778
      %v905 = vpop.f32.mrf.mxu0
      %v906 = vadd.f32 %v620, %v905
      %907 = vmatmul.f32.gmra.mxu0 %v781
      %v908 = vpop.f32.mrf.mxu0
      %v909 = vadd.f32 %v620, %v908
      %910 = vdwg.mxu0
      %v911 = vmax.f32 %v816, 0.0
      %v912 = vmax.f32 %v819, 0.0
      %v913 = vmax.f32 %v822, 0.0
      %v914 = vmax.f32 %v825, 0.0
      %v915 = vmax.f32 %v828, 0.0
      %v916 = vmax.f32 %v831, 0.0
      %v917 = vmax.f32 %v834, 0.0
      %v918 = vmax.f32 %v837, 0.0
      %v919 = vmax.f32 %v840, 0.0
      %v920 = vmax.f32 %v843, 0.0
      %v921 = vmax.f32 %v846, 0.0
      %v922 = vmax.f32 %v849, 0.0
      %v923 = vmax.f32 %v852, 0.0
      %v924 = vmax.f32 %v855, 0.0
      %v925 = vmax.f32 %v858, 0.0
      %v926 = vmax.f32 %v861, 0.0
      %v927 = vmax.f32 %v864, 0.0
      %v928 = vmax.f32 %v867, 0.0
      %v929 = vmax.f32 %v870, 0.0
      %v930 = vmax.f32 %v873, 0.0
      %v931 = vmax.f32 %v876, 0.0
      %v932 = vmax.f32 %v879, 0.0
      %v933 = vmax.f32 %v882, 0.0
      %v934 = vmax.f32 %v885, 0.0
      %v935 = vmax.f32 %v888, 0.0
      %v936 = vmax.f32 %v891, 0.0
      %v937 = vmax.f32 %v894, 0.0
      %v938 = vmax.f32 %v897, 0.0
      %v939 = vmax.f32 %v900, 0.0
      %v940 = vmax.f32 %v903, 0.0
      %v941 = vmax.f32 %v906, 0.0
      %v942 = vmax.f32 %v909, 0.0
      %vm943 = vcmask 326656
      %944 = vst.msk [vmem:[%s280] sm:$0xff] %vm943, %v911
      %945 = vst.msk [vmem:[%s280 + $0x8] sm:$0xff] %vm943, %v912
      %946 = vst.msk [vmem:[%s280 + $0x10] sm:$0xff] %vm943, %v913
      %947 = vst.msk [vmem:[%s280 + $0x18] sm:$0xff] %vm943, %v914
      %948 = vst.msk [vmem:[%s280 + $0x20] sm:$0xff] %vm943, %v915
      %949 = vst.msk [vmem:[%s280 + $0x28] sm:$0xff] %vm943, %v916
      %950 = vst.msk [vmem:[%s280 + $0x30] sm:$0xff] %vm943, %v917
      %951 = vst.msk [vmem:[%s280 + $0x38] sm:$0xff] %vm943, %v918
      %952 = vst.msk [vmem:[%s280 + $0x40] sm:$0xff] %vm943, %v919
      %953 = vst.msk [vmem:[%s280 + $0x48] sm:$0xff] %vm943, %v920
      %954 = vst.msk [vmem:[%s280 + $0x50] sm:$0xff] %vm943, %v921
      %955 = vst.msk [vmem:[%s280 + $0x58] sm:$0xff] %vm943, %v922
      %956 = vst.msk [vmem:[%s280 + $0x60] sm:$0xff] %vm943, %v923
      %957 = vst.msk [vmem:[%s280 + $0x68] sm:$0xff] %vm943, %v924
      %958 = vst.msk [vmem:[%s280 + $0x70] sm:$0xff] %vm943, %v925
      %959 = vst.msk [vmem:[%s280 + $0x78] sm:$0xff] %vm943, %v926
      %960 = vst.msk [vmem:[%s280 + $0x80] sm:$0xff] %vm943, %v927
      %961 = vst.msk [vmem:[%s280 + $0x88] sm:$0xff] %vm943, %v928
      %962 = vst.msk [vmem:[%s280 + $0x90] sm:$0xff] %vm943, %v929
      %963 = vst.msk [vmem:[%s280 + $0x98] sm:$0xff] %vm943, %v930
      %964 = vst.msk [vmem:[%s280 + $0xa0] sm:$0xff] %vm943, %v931
      %965 = vst.msk [vmem:[%s280 + $0xa8] sm:$0xff] %vm943, %v932
      %966 = vst.msk [vmem:[%s280 + $0xb0] sm:$0xff] %vm943, %v933
      %967 = vst.msk [vmem:[%s280 + $0xb8] sm:$0xff] %vm943, %v934
      %968 = vst.msk [vmem:[%s280 + $0xc0] sm:$0xff] %vm943, %v935
      %969 = vst.msk [vmem:[%s280 + $0xc8] sm:$0xff] %vm943, %v936
      %970 = vst.msk [vmem:[%s280 + $0xd0] sm:$0xff] %vm943, %v937
      %971 = vst.msk [vmem:[%s280 + $0xd8] sm:$0xff] %vm943, %v938
      %972 = vst.msk [vmem:[%s280 + $0xe0] sm:$0xff] %vm943, %v939
      %973 = vst.msk [vmem:[%s280 + $0xe8] sm:$0xff] %vm943, %v940
      %974 = vst.msk [vmem:[%s280 + $0xf0] sm:$0xff] %vm943, %v941
      %975 = vst.msk [vmem:[%s280 + $0xf8] sm:$0xff] %vm943, %v942
      %s976 = smul.u32 32, %s18
      %p977 = scmp.lt.s32.totalorder %s976, 63
      %s978 = scalar_select %p977, %s976, 63
      %s979 = smul.addr %s978, 8
      %s980 = scalar_lea.vmem %s7, %s979
      // Predicated region
      $region49: #{tpu_custom_call.1} parent=47 // pred_check
        %p981 = pneg %p188
      $region50: #{tpu_custom_call.1} parent=47 // pred_check_branch
        %983 = sbr.rel (%p981) target = $region52
      $region51: #{tpu_custom_call.1} parent=47 // pred_region
        %s984 = smul.u32 32, %s18
      $region52: #{tpu_custom_call.1} parent=47 // pred_fallthru
        _
    $region48: #{tpu_custom_call.1} parent=5 // pred_fallthru
      _
    %p985 = scmp.le.s32.totalorder 2, %s13
    // Predicated region
    $region53: #{tpu_custom_call.1} parent=5 // pred_check
      %p986 = pneg %p985
    $region54: #{tpu_custom_call.1} parent=5 // pred_check_branch
      %988 = sbr.rel (%p986) target = $region56
    $region55: #{tpu_custom_call.1} parent=5 // pred_region
      %s989 = ssub.s32 %s13, 2
      // Predicated region
      $region57: #{tpu_custom_call.1} parent=55 // pred_check
        %p990 = pneg %p194
      $region58: #{tpu_custom_call.1} parent=55 // pred_check_branch
        %992 = sbr.rel (%p990) target = $region60
      $region59: #{tpu_custom_call.1} parent=55 // pred_region
        %s993 = smul.u32 32, %s19
        %p994 = scmp.lt.s32.totalorder %s993, 63
        %s995 = scalar_select %p994, %s993, 63
        %s996 = smul.addr %s995, 8
        %s997 = scalar_lea.vmem %s7, %s996
      $region60: #{tpu_custom_call.1} parent=55 // pred_fallthru
        _
    $region56: #{tpu_custom_call.1} parent=5 // pred_fallthru
      _
  $region6: #{tpu_custom_call.1} parent=0 // loop_footer
    %s17 = sadd.s32 1, %s13
  $region7: #{tpu_custom_call.1} parent=0 // loop_footer_branch
    %12 = sbr.rel target = $region3
  $region8: #{tpu_custom_call.1} parent=0 // loop_exit
    _

</llo_original>
